<compile_context>
chip_gen: v7x
topology: tpu7x:2x2x1
jax: 0.10.0
libtpu: 0.0.40
codegen_flags: <defaults>
</compile_context>

<pallas_src>
import jax
import jax.numpy as jnp
from jax.experimental import pallas as pl
from jax.experimental.pallas import tpu as pltpu


# ----------------------------------------------------------------------------- #
# Hardware / tiling helpers                                                      #
# ----------------------------------------------------------------------------- #
def _tpu_vmem_bytes():
    """Physical VMEM capacity; conservative (v7x-like 64 MiB) fallback."""
    try:
        return int(pltpu.get_tpu_info().vmem_capacity_bytes)
    except Exception:
        return 64 * 1024 * 1024


def _pick_tile(dim, want, align=128):
    """Largest divisor of `dim` that is <= want and a multiple of `align`.

    Falls back to the smallest aligned divisor >= want, then to the full dim.
    Never silently produces an illegal / enormous block like the old
    `if dim % want: want = dim` fallback did.
    """
    want = max(1, min(want, dim))
    aligned = [d for d in range(align, dim + 1, align) if dim % d == 0]
    below = [d for d in aligned if d <= want]
    if below:
        return max(below)
    if aligned:
        return min(aligned)
    return dim


def _round_up(n, m):
    return ((n + m - 1) // m) * m


# ----------------------------------------------------------------------------- #
# Sobel preprocessing kernel (grayscale 1x1 conv + fixed 3x3 sobel conv, pad=1)  #
# In-register: XLU rolls for the +-1 row/col shifts, precomputed boundary masks  #
# ----------------------------------------------------------------------------- #
def _shift(g, offset, axis, mask, size):
    """out[..., i, ...] = g[..., i + offset, ...], zero where out of range (pad=1)."""
    amount = (-offset) % size  # non-negative rotation for pltpu.roll
    return jnp.where(mask, pltpu.roll(g, amount, axis), 0.0)


def _sobel_kernel(x_ref, o_ref):
    # x_ref: (1, 3, H, W)   o_ref: (1, 2, H, W)   (one batch element per grid step)
    _, _, H, W = x_ref.shape

    # grayscale conv: weight = 1/3 per input channel, bias = 0
    gray = ((x_ref[:, 0] + x_ref[:, 1] + x_ref[:, 2]) * (1.0 / 3.0)).astype(jnp.float32)

    # Boundary masks computed once and reused by all 8 shifts (JAX does not CSE
    # broadcast_in_dim / repeated compares).
    row = jax.lax.broadcasted_iota(jnp.int32, (1, H, W), 1)
    col = jax.lax.broadcasted_iota(jnp.int32, (1, H, W), 2)
    row_lo = row >= 1          # valid for out[i] = g[i-1]
    row_hi = row < H - 1       # valid for out[i] = g[i+1]
    col_lo = col >= 1
    col_hi = col < W - 1

    # row-shifted copies: g[i-1, j] and g[i+1, j] with zero padding
    r_m1 = _shift(gray, -1, 1, row_lo, H)
    r_p1 = _shift(gray, +1, 1, row_hi, H)

    # filter 0: [[1,0,-1],[2,0,-2],[1,0,-1]]  ->  gx = colshift(-1)(v) - colshift(+1)(v)
    v = r_m1 + 2.0 * gray + r_p1
    gx = _shift(v, -1, 2, col_lo, W) - _shift(v, +1, 2, col_hi, W)

    # filter 1: [[1,2,1],[0,0,0],[-1,-2,-1]]  ->  gy = rowshift(-1)(u) - rowshift(+1)(u)
    u = _shift(gray, -1, 2, col_lo, W) + 2.0 * gray + _shift(gray, +1, 2, col_hi, W)
    gy = _shift(u, -1, 1, row_lo, H) - _shift(u, +1, 1, row_hi, H)

    o_ref[:, 0] = gx.astype(o_ref.dtype)
    o_ref[:, 1] = gy.astype(o_ref.dtype)


def sobel_pallas(x):
    """x: (B, 3, H, W) -> (B, 2, H, W).  One batch element per grid step (bounded VMEM,
    pipelined HBM<->VMEM, batch split across TensorCores on multi-core parts)."""
    B, C, H, W = x.shape
    assert C == 3
    return pl.pallas_call(
        _sobel_kernel,
        out_shape=jax.ShapeDtypeStruct((B, 2, H, W), x.dtype),
        grid=(B,),
        in_specs=[pl.BlockSpec((1, 3, H, W), lambda b: (b, 0, 0, 0))],
        out_specs=pl.BlockSpec((1, 2, H, W), lambda b: (b, 0, 0, 0)),
        compiler_params=pltpu.CompilerParams(dimension_semantics=("parallel",)),
    )(x)


# ----------------------------------------------------------------------------- #
# Fused Linear (+bias, optional ReLU): tiled matmul, K-accumulation into o_ref   #
# ----------------------------------------------------------------------------- #
def _make_linear_kernel(relu):
    def kernel(x_ref, w_ref, b_ref, o_ref):
        k = pl.program_id(1)

        @pl.when(k == 0)
        def _():
            o_ref[...] = jnp.zeros_like(o_ref)

        # bf16 x bf16 on the MXU, f32 accumulation directly into the resident
        # output block (output block index is independent of k).
        o_ref[...] += jnp.dot(
            x_ref[...].astype(jnp.bfloat16),
            w_ref[...],
            preferred_element_type=jnp.float32,
        )

        @pl.when(k == pl.num_programs(1) - 1)
        def _():
            r = o_ref[...] + b_ref[...]
            if relu:
                r = jnp.maximum(r, 0.0)
            o_ref[...] = r

    return kernel


def fused_linear(x, w, b, *, relu, tn=2048, tk=2048):
    """x: (B, K) f32, w: (K, N) bf16, b: (1, N) f32 -> (B, N) f32. y = relu?(x @ w + b).

    Weight-streaming GEMV (B is tiny): the binding resource is the HBM weight DMA
    stream, so tiles are chosen to minimise grid steps while fitting VMEM, the weight
    stream is multi-buffered, and the N axis stays "parallel" for megacore sharding.
    """
    B, K = x.shape
    Kw, N = w.shape
    assert K == Kw and b.shape == (1, N)

    tn = _pick_tile(N, tn)
    tk = _pick_tile(K, tk)
    grid = (N // tn, K // tk)

    # Deepen the weight-stream pipeline when there are enough K steps to benefit.
    w_buffers = 3 if grid[1] >= 3 else 2

    # VMEM budget: weight tiles dominate; x/bias/out tiles + slack for compiler scratch.
    w_tile_bytes = tk * tn * w.dtype.itemsize
    budget = (w_tile_bytes * w_buffers
              + 2 * B * tk * x.dtype.itemsize
              + 2 * tn * 4
              + 2 * B * tn * 4
              + 8 * 1024 * 1024)
    vmem_cap = _tpu_vmem_bytes()
    vmem_limit = max(min(max(budget, 32 * 1024 * 1024), vmem_cap - 4 * 1024 * 1024),
                     16 * 1024 * 1024)

    def build(nbuf):
        if nbuf > 2:
            w_spec = pl.BlockSpec((tk, tn), lambda j, k: (k, j),
                                  pipeline_mode=pl.Buffered(nbuf))
        else:
            w_spec = pl.BlockSpec((tk, tn), lambda j, k: (k, j))
        return pl.pallas_call(
            _make_linear_kernel(relu),
            out_shape=jax.ShapeDtypeStruct((B, N), jnp.float32),
            grid_spec=pltpu.PrefetchScalarGridSpec(
                num_scalar_prefetch=0,
                grid=grid,
                in_specs=[
                    pl.BlockSpec((B, tk), lambda j, k: (0, k)),
                    w_spec,
                    pl.BlockSpec((1, tn), lambda j, k: (0, j)),
                ],
                out_specs=pl.BlockSpec((B, tn), lambda j, k: (0, j)),
            ),
            compiler_params=pltpu.CompilerParams(
                dimension_semantics=("parallel", "arbitrary"),
                vmem_limit_bytes=vmem_limit,
            ),
        )

    try:
        return build(w_buffers)(x, w, b)
    except Exception:
        # TODO(synk): pipeline_mode=pl.Buffered may be unavailable on some jax
        # versions; fall back to default double-buffering (same numerics).
        return build(2)(x, w, b)


# ----------------------------------------------------------------------------- #
# AlexNet wrapper                                                                #
# ----------------------------------------------------------------------------- #
class AlexNetPallas:
    def __init__(self, num_classes, sobel, key):
        k1, k2, k3 = jax.random.split(key, 3)
        # PyTorch init: Linear weights ~ N(0, 0.01), biases = 0.
        # Weights stored transposed (in_features, out_features), cast to bf16.
        # TODO(synk): int8 (v5e/v6e) or fp8 (v7x) weight quantization would halve the
        # memory-bound weight stream again; kept bf16 here for bit-exact-ish parity.
        self.w1 = (jax.random.normal(k1, (256 * 6 * 6, 4096), jnp.float32)
                   * 0.01).astype(jnp.bfloat16)
        self.b1 = jnp.zeros((1, 4096), jnp.float32)
        self.w2 = (jax.random.normal(k2, (4096, 4096), jnp.float32)
                   * 0.01).astype(jnp.bfloat16)
        self.b2 = jnp.zeros((1, 4096), jnp.float32)

        # top_layer padded to a lane-dense (multiple of 128) output width.
        self.num_classes = num_classes
        n_pad = _round_up(max(num_classes, 1), 128)
        wt = jax.random.normal(k3, (4096, num_classes), jnp.float32) * 0.01
        self.wt = (jnp.zeros((4096, n_pad), jnp.bfloat16)
                   .at[:, :num_classes].set(wt.astype(jnp.bfloat16)))
        self.bt = jnp.zeros((1, n_pad), jnp.float32)
        self.sobel = sobel

        # Generation-aware MLP tiling, keyed off physical VMEM:
        #   >=100 MiB (v5e/v6e): full-N tiles -> few, fully-contiguous weight DMAs.
        #   < 100 MiB (v7x): tn=2048 keeps >=2 tiles on the "parallel" N axis so both
        #   TensorCores stream half the weights; larger tk cuts per-step overhead.
        self._big_vmem = _tpu_vmem_bytes() >= 100 * 1024 * 1024

    def _features_stub(self, x):
        # TODO(synk): `features` is an injected nn.Module with no definition in the
        # source; deterministic plain-JAX shape stub producing (B, 256, 6, 6).
        B, C, H, W = x.shape
        pooled = jax.image.resize(x, (B, C, 6, 6), method="linear")
        reps = -(-256 // C)
        return jnp.tile(pooled, (1, reps, 1, 1))[:, :256]

    def __call__(self, x):
        if self.sobel:
            x = sobel_pallas(x)                       # (B, 2, H, W), Pallas kernel
        x = self._features_stub(x)                    # (B, 256, 6, 6), plain-JAX stub
        x = x.reshape(x.shape[0], 256 * 6 * 6)        # x.view(B, 9216)

        if self._big_vmem:
            tn1, tk1 = 4096, 2304                     # grid (1, 4) for layer 1
            tn2, tk2 = 4096, 2048                     # grid (1, 2) for layer 2
        else:
            tn1, tk1 = 2048, 2304                     # grid (2, 4), 2 TC-parallel tiles
            tn2, tk2 = 2048, 2048                     # grid (2, 2)

        # classifier: Dropout -> Linear+ReLU -> Dropout -> Linear+ReLU (dropout = id)
        x = fused_linear(x, self.w1, self.b1, relu=True, tn=tn1, tk=tk1)
        x = fused_linear(x, self.w2, self.b2, relu=True, tn=tn2, tk=tk2)
        # top_layer (lane-padded): full-K single-step grid, one contiguous weight DMA
        x = fused_linear(x, self.wt, self.bt, relu=False,
                         tn=self.wt.shape[1], tk=self.wt.shape[0])
        return x[:, :self.num_classes]


if __name__ == "__main__":
    key = jax.random.PRNGKey(0)
    kx, kp = jax.random.split(key)

    B, H, W = 2, 16, 16
    num_classes = 10
    x = jax.random.normal(kx, (B, 3, H, W), jnp.float32)

    model = AlexNetPallas(num_classes=num_classes, sobel=True, key=kp)
    out = model(x)
    out = jax.block_until_ready(out)

    assert out.shape == (B, num_classes), out.shape
    assert bool(jnp.all(jnp.isfinite(out)))
    print("KERNEL_OK")
</pallas_src>

<mosaic_0001>
module attributes {stable_mosaic.version = 11 : i64} {
  func.func @_sobel_kernel(%arg0: i32, %arg1: memref<1x3x16x16xf32, #tpu.memory_space<vmem>>, %arg2: memref<1x2x16x16xf32, #tpu.memory_space<vmem>>) attributes {dimension_semantics = [#tpu.dimension_semantics<parallel>], iteration_bounds = array<i64: 2>, scalar_prefetch = 0 : i64, scratch_operands = 0 : i64, tpu.core_type = #tpu.core_type<tc>, window_params = [{transform_indices = @transform_0, window_bounds = array<i64: 1, 3, 16, 16>}, {transform_indices = @transform_1, window_bounds = array<i64: 1, 2, 16, 16>}]} {
    %c0 = arith.constant 0 : index
    %c0_0 = arith.constant 0 : index
    %c0_1 = arith.constant 0 : index
    %c0_2 = arith.constant 0 : index
    %0 = vector.load %arg1[%c0, %c0_0, %c0_1, %c0_2] : memref<1x3x16x16xf32, #tpu.memory_space<vmem>>, vector<1x1x16x16xf32>
    %1 = vector.shape_cast %0 : vector<1x1x16x16xf32> to vector<1x16x16xf32>
    %c0_3 = arith.constant 0 : index
    %c1 = arith.constant 1 : index
    %c0_4 = arith.constant 0 : index
    %c0_5 = arith.constant 0 : index
    %2 = vector.load %arg1[%c0_3, %c1, %c0_4, %c0_5] : memref<1x3x16x16xf32, #tpu.memory_space<vmem>>, vector<1x1x16x16xf32>
    %3 = vector.shape_cast %2 : vector<1x1x16x16xf32> to vector<1x16x16xf32>
    %4 = arith.addf %1, %3 : vector<1x16x16xf32>
    %c0_6 = arith.constant 0 : index
    %c2 = arith.constant 2 : index
    %c0_7 = arith.constant 0 : index
    %c0_8 = arith.constant 0 : index
    %5 = vector.load %arg1[%c0_6, %c2, %c0_7, %c0_8] : memref<1x3x16x16xf32, #tpu.memory_space<vmem>>, vector<1x1x16x16xf32>
    %6 = vector.shape_cast %5 : vector<1x1x16x16xf32> to vector<1x16x16xf32>
    %7 = arith.addf %4, %6 : vector<1x16x16xf32>
    %cst = arith.constant 0.333333343 : f32
    %8 = vector.broadcast %cst : f32 to vector<1x16x16xf32>
    %9 = arith.mulf %7, %8 : vector<1x16x16xf32>
    %10 = tpu.iota {dimensions = array<i32: 1>} : vector<1x16x16xi32>
    %11 = tpu.iota {dimensions = array<i32: 2>} : vector<1x16x16xi32>
    %c1_i32 = arith.constant 1 : i32
    %12 = vector.broadcast %c1_i32 : i32 to vector<1x16x16xi32>
    %13 = arith.cmpi sge, %10, %12 : vector<1x16x16xi32>
    %c15_i32 = arith.constant 15 : i32
    %14 = vector.broadcast %c15_i32 : i32 to vector<1x16x16xi32>
    %15 = arith.cmpi slt, %10, %14 : vector<1x16x16xi32>
    %c1_i32_9 = arith.constant 1 : i32
    %16 = vector.broadcast %c1_i32_9 : i32 to vector<1x16x16xi32>
    %17 = arith.cmpi sge, %11, %16 : vector<1x16x16xi32>
    %c15_i32_10 = arith.constant 15 : i32
    %18 = vector.broadcast %c15_i32_10 : i32 to vector<1x16x16xi32>
    %19 = arith.cmpi slt, %11, %18 : vector<1x16x16xi32>
    %c1_i32_11 = arith.constant 1 : i32
    %20 = tpu.dynamic_rotate %9 by %c1_i32_11 dim 1 : vector<1x16x16xf32>, i32 -> vector<1x16x16xf32>
    %cst_12 = arith.constant 0.000000e+00 : f32
    %21 = vector.broadcast %cst_12 : f32 to vector<1x16x16xf32>
    %22 = arith.select %13, %20, %21 : vector<1x16x16xi1>, vector<1x16x16xf32>
    %c15_i32_13 = arith.constant 15 : i32
    %23 = tpu.dynamic_rotate %9 by %c15_i32_13 dim 1 : vector<1x16x16xf32>, i32 -> vector<1x16x16xf32>
    %cst_14 = arith.constant 0.000000e+00 : f32
    %24 = vector.broadcast %cst_14 : f32 to vector<1x16x16xf32>
    %25 = arith.select %15, %23, %24 : vector<1x16x16xi1>, vector<1x16x16xf32>
    %cst_15 = arith.constant 2.000000e+00 : f32
    %26 = vector.broadcast %cst_15 : f32 to vector<1x16x16xf32>
    %27 = arith.mulf %26, %9 : vector<1x16x16xf32>
    %28 = arith.addf %22, %27 : vector<1x16x16xf32>
    %29 = arith.addf %28, %25 : vector<1x16x16xf32>
    %c1_i32_16 = arith.constant 1 : i32
    %30 = tpu.dynamic_rotate %29 by %c1_i32_16 dim 2 : vector<1x16x16xf32>, i32 -> vector<1x16x16xf32>
    %cst_17 = arith.constant 0.000000e+00 : f32
    %31 = vector.broadcast %cst_17 : f32 to vector<1x16x16xf32>
    %32 = arith.select %17, %30, %31 : vector<1x16x16xi1>, vector<1x16x16xf32>
    %c15_i32_18 = arith.constant 15 : i32
    %33 = tpu.dynamic_rotate %29 by %c15_i32_18 dim 2 : vector<1x16x16xf32>, i32 -> vector<1x16x16xf32>
    %cst_19 = arith.constant 0.000000e+00 : f32
    %34 = vector.broadcast %cst_19 : f32 to vector<1x16x16xf32>
    %35 = arith.select %19, %33, %34 : vector<1x16x16xi1>, vector<1x16x16xf32>
    %36 = arith.subf %32, %35 : vector<1x16x16xf32>
    %c1_i32_20 = arith.constant 1 : i32
    %37 = tpu.dynamic_rotate %9 by %c1_i32_20 dim 2 : vector<1x16x16xf32>, i32 -> vector<1x16x16xf32>
    %cst_21 = arith.constant 0.000000e+00 : f32
    %38 = vector.broadcast %cst_21 : f32 to vector<1x16x16xf32>
    %39 = arith.select %17, %37, %38 : vector<1x16x16xi1>, vector<1x16x16xf32>
    %cst_22 = arith.constant 2.000000e+00 : f32
    %40 = vector.broadcast %cst_22 : f32 to vector<1x16x16xf32>
    %41 = arith.mulf %40, %9 : vector<1x16x16xf32>
    %42 = arith.addf %39, %41 : vector<1x16x16xf32>
    %c15_i32_23 = arith.constant 15 : i32
    %43 = tpu.dynamic_rotate %9 by %c15_i32_23 dim 2 : vector<1x16x16xf32>, i32 -> vector<1x16x16xf32>
    %cst_24 = arith.constant 0.000000e+00 : f32
    %44 = vector.broadcast %cst_24 : f32 to vector<1x16x16xf32>
    %45 = arith.select %19, %43, %44 : vector<1x16x16xi1>, vector<1x16x16xf32>
    %46 = arith.addf %42, %45 : vector<1x16x16xf32>
    %c1_i32_25 = arith.constant 1 : i32
    %47 = tpu.dynamic_rotate %46 by %c1_i32_25 dim 1 : vector<1x16x16xf32>, i32 -> vector<1x16x16xf32>
    %cst_26 = arith.constant 0.000000e+00 : f32
    %48 = vector.broadcast %cst_26 : f32 to vector<1x16x16xf32>
    %49 = arith.select %13, %47, %48 : vector<1x16x16xi1>, vector<1x16x16xf32>
    %c15_i32_27 = arith.constant 15 : i32
    %50 = tpu.dynamic_rotate %46 by %c15_i32_27 dim 1 : vector<1x16x16xf32>, i32 -> vector<1x16x16xf32>
    %cst_28 = arith.constant 0.000000e+00 : f32
    %51 = vector.broadcast %cst_28 : f32 to vector<1x16x16xf32>
    %52 = arith.select %15, %50, %51 : vector<1x16x16xi1>, vector<1x16x16xf32>
    %53 = arith.subf %49, %52 : vector<1x16x16xf32>
    %c0_29 = arith.constant 0 : index
    %c0_30 = arith.constant 0 : index
    %c0_31 = arith.constant 0 : index
    %c0_32 = arith.constant 0 : index
    %54 = vector.load %arg2[%c0_29, %c0_30, %c0_31, %c0_32] : memref<1x2x16x16xf32, #tpu.memory_space<vmem>>, vector<1x1x16x16xf32>
    %55 = vector.shape_cast %54 : vector<1x1x16x16xf32> to vector<1x16x16xf32>
    %56 = vector.shape_cast %36 : vector<1x16x16xf32> to vector<1x1x16x16xf32>
    tpu.vector_store %arg2[%c0_29, %c0_30, %c0_31, %c0_32], %56 {strides = array<i32>} : memref<1x2x16x16xf32, #tpu.memory_space<vmem>>, vector<1x1x16x16xf32>,
    %c0_33 = arith.constant 0 : index
    %c1_34 = arith.constant 1 : index
    %c0_35 = arith.constant 0 : index
    %c0_36 = arith.constant 0 : index
    %57 = vector.load %arg2[%c0_33, %c1_34, %c0_35, %c0_36] : memref<1x2x16x16xf32, #tpu.memory_space<vmem>>, vector<1x1x16x16xf32>
    %58 = vector.shape_cast %57 : vector<1x1x16x16xf32> to vector<1x16x16xf32>
    %59 = vector.shape_cast %53 : vector<1x16x16xf32> to vector<1x1x16x16xf32>
    tpu.vector_store %arg2[%c0_33, %c1_34, %c0_35, %c0_36], %59 {strides = array<i32>} : memref<1x2x16x16xf32, #tpu.memory_space<vmem>>, vector<1x1x16x16xf32>,
    return
  }
  func.func @transform_0(%arg0: i32) -> (i32, i32, i32, i32) {
    %c0_i32 = arith.constant 0 : i32
    %c0_i32_0 = arith.constant 0 : i32
    %c0_i32_1 = arith.constant 0 : i32
    %c0_i32_2 = arith.constant 0 : i32
    return %arg0, %c0_i32, %c0_i32_0, %c0_i32_1 : i32, i32, i32, i32
  }
  func.func @transform_1(%arg0: i32) -> (i32, i32, i32, i32) {
    %c0_i32 = arith.constant 0 : i32
    %c0_i32_0 = arith.constant 0 : i32
    %c0_i32_1 = arith.constant 0 : i32
    %c0_i32_2 = arith.constant 0 : i32
    return %arg0, %c0_i32, %c0_i32_0, %c0_i32_1 : i32, i32, i32, i32
  }
}

</mosaic_0001>

<llo_original>
// kernel: tpu_custom_call.1
$region0: #{tpu_custom_call.1}
  #allocation0 [shape = 'u32[]', space=smem, size = 0x4, offset = 0x4, fixed_abs, tag = 'smem constant byte address 0x4 - core index']
  #allocation1 [shape = 'u32[144,128]{1,0:T(1,128)}', space=vmem, size = 0x12000, scoped, tag = 'internal scratch']
  %s0 = inlined_call_operand.hbm [shape: f32[2,3,16,16], index: 0, kind: input, shape index: {}]
  %s1 = inlined_call_operand.hbm [shape: f32[2,2,16,16], index: 1, kind: output, shape index: {}]
  %s2 = sld [smem:[#allocation0]]
  $region41: #{tpu_custom_call.1} parent=0
    _
  %s4 = ssub.s32 1, %s2
  %s5 = scalar_select 0, %s4, %s2
  $region1: #{tpu_custom_call.1} parent=0
    #allocation2 [shape = 'u8[49152]{0}', space=vmem, size = 0xc000, scoped, tag = 'input window, operand 0']
    #allocation3 [shape = 's32[2]{0}', space=sflag, size = 0x8, scoped, tag = 'scoped memory for tpu_custom_call.1']
    #allocation4 [shape = 's32[2]{0}', space=sflag, size = 0x8, scoped, tag = 'scoped memory for tpu_custom_call.1']
    #allocation5 [shape = 'u8[32768]{0}', space=vmem, size = 0x8000, scoped, tag = 'output window, operand 0']
    %6 = vsyncpa [#allocation3], 0
    %s7 = scalar_lea.sflag [#allocation3], 1
    %8 = vsyncpa %s7, 0
    %9 = vsyncpa [#allocation4], 0
    %s10 = scalar_lea.sflag [#allocation4], 1
    %11 = vsyncpa %s10, 0
    loop: start=0, step=1, limit=4
    $region2: #{tpu_custom_call.1} parent=1 // loop_pre_header
      _
    $region3: #{tpu_custom_call.1} parent=1 // loop_header
      %s13 = sphi 0, %s17
      %p14 = scmp.ge.s32.totalorder %s13, 4
      %s23 = sphi 0, %s25
      %s26 = sphi 0, %s23
      %s27 = sphi 0, %s26
      %s43 = sphi 0, %s27
      %s49 = sphi 0, %s51
      %s52 = sphi 0, %s49
      %s53 = sphi 0, %s52
      %s69 = sphi 0, %s53
    $region4: #{tpu_custom_call.1} parent=1 // loop_header_branch
      %16 = sbr.rel (%p14) target = $region8
    $region5: #{tpu_custom_call.1} parent=1 // loop_body
      %s18 = ssub.s32 %s13, 1
      %s19 = ssub.s32 %s13, 2
      %s20 = sadd.s32 %s13, 1
      %s21 = ssub.s32 %s13, %s20
      %p22 = scmp.eq.s32.totalorder %s21, 0
      %s24 = sadd.s32 %s23, 1
      %s25 = scalar_select %p22, %s23, %s24
      %p28 = pneg %p22
      %p29 = scmp.eq.s32.totalorder %s13, 1
      %p30 = por %p28, %p29
      %p31 = scmp.ne.s32.totalorder %s23, %s26
      %p32 = scmp.eq.s32.totalorder %s13, 0
      %p33 = por %p31, %p32
      %p34 = scmp.ne.s32.totalorder %s23, %s26
      %p35 = scmp.eq.s32.totalorder %s18, 1
      %p36 = por %p34, %p35
      %p37 = scmp.ne.s32.totalorder %s26, %s27
      %p38 = scmp.eq.s32.totalorder %s18, 0
      %p39 = por %p37, %p38
      %p40 = scmp.ne.s32.totalorder %s26, %s27
      %p41 = scmp.eq.s32.totalorder %s19, 1
      %p42 = por %p40, %p41
      %p44 = scmp.ne.s32.totalorder %s27, %s43
      %p45 = scmp.eq.s32.totalorder %s19, 0
      %p46 = por %p44, %p45
      %s47 = ssub.s32 %s13, %s20
      %p48 = scmp.eq.s32.totalorder %s47, 0
      %s50 = sadd.s32 %s49, 1
      %s51 = scalar_select %p48, %s49, %s50
      %p54 = pneg %p48
      %p55 = scmp.eq.s32.totalorder %s13, 1
      %p56 = por %p54, %p55
      %p57 = scmp.ne.s32.totalorder %s49, %s52
      %p58 = scmp.eq.s32.totalorder %s13, 0
      %p59 = por %p57, %p58
      %p60 = scmp.ne.s32.totalorder %s49, %s52
      %p61 = scmp.eq.s32.totalorder %s18, 1
      %p62 = por %p60, %p61
      %p63 = scmp.ne.s32.totalorder %s52, %s53
      %p64 = scmp.eq.s32.totalorder %s18, 0
      %p65 = por %p63, %p64
      %p66 = scmp.ne.s32.totalorder %s52, %s53
      %p67 = scmp.eq.s32.totalorder %s19, 1
      %p68 = por %p66, %p67
      %p70 = scmp.ne.s32.totalorder %s53, %s69
      %p71 = scmp.eq.s32.totalorder %s19, 0
      %p72 = por %p70, %p71
      %p73 = scmp.le.s32.totalorder 1, %s13
      %p74 = scmp.lt.s32.totalorder %s13, 3
      %p75 = pnand %p73, %p74
      %p76 = pneg %p75
      // Predicated region
      $region9: #{tpu_custom_call.1} parent=5 // pred_check
        _
      $region10: #{tpu_custom_call.1} parent=5 // pred_check_branch
        %78 = sbr.rel (%p75) target = $region12
      $region11: #{tpu_custom_call.1} parent=5 // pred_region
        %s79 = ssub.s32 %s13, 1
      $region12: #{tpu_custom_call.1} parent=5 // pred_fallthru
        _
      %p80 = scmp.lt.s32.totalorder %s13, 2
      // Predicated region
      $region13: #{tpu_custom_call.1} parent=5 // pred_check
        %p81 = pneg %p80
      $region14: #{tpu_custom_call.1} parent=5 // pred_check_branch
        %83 = sbr.rel (%p81) target = $region16
      $region15: #{tpu_custom_call.1} parent=5 // pred_region
        // Predicated region
        $region17: #{tpu_custom_call.1} parent=15 // pred_check
          %p84 = pneg %p33
        $region18: #{tpu_custom_call.1} parent=15 // pred_check_branch
          %86 = sbr.rel (%p84) target = $region20
        $region19: #{tpu_custom_call.1} parent=15 // pred_region
          %s87 = sand.u32 %s23, 1
          %s88 = scalar_lea.sflag [#allocation3], %s87
          %s89 = sand.u32 %s23, 1
          %s90 = smul.addr %s89, 48
          %s91 = scalar_lea.vmem [#allocation2], %s90
          %s93 = ssub.s32 768, 768
          %94 = vsyncadd %s88, %s93
          %s95 = smul.addr %s13, 6
          %s96 = smul.addr %s95, 128
          %s97 = scalar_lea.hbm %s0, %s96
          %s98 = sshll.u32 %s91, 4
          %s99 = int_to_ptr.vmem [resolvable:$true] %s98
          %104 = dma.hbm_to_vmem [thread:$0]  %s97, 768, %s99, %s88, 128, 128, 8
        $region20: #{tpu_custom_call.1} parent=15 // pred_fallthru
          _
      $region16: #{tpu_custom_call.1} parent=5 // pred_fallthru
        _
      %p105 = scmp.le.s32.totalorder 1, %s13
      %p106 = scmp.lt.s32.totalorder %s13, 3
      %p107 = pnand %p105, %p106
      %p108 = pneg %p107
      // Predicated region
      $region21: #{tpu_custom_call.1} parent=5 // pred_check
        _
      $region22: #{tpu_custom_call.1} parent=5 // pred_check_branch
        %110 = sbr.rel (%p107) target = $region24
      $region23: #{tpu_custom_call.1} parent=5 // pred_region
        %s111 = ssub.s32 %s13, 1
        %s112 = sand.u32 %s26, 1
        %s113 = scalar_lea.sflag [#allocation3], %s112
        %s114 = sand.u32 %s26, 1
        %s115 = smul.addr %s114, 48
        %s116 = scalar_lea.vmem [#allocation2], %s115
        // Predicated region
        $region25: #{tpu_custom_call.1} parent=23 // pred_check
          %p117 = pneg %p39
        $region26: #{tpu_custom_call.1} parent=23 // pred_check_branch
          %119 = sbr.rel (%p117) target = $region28
        $region27: #{tpu_custom_call.1} parent=23 // pred_region
          %120 = dma.done %s113, 768
        $region28: #{tpu_custom_call.1} parent=23 // pred_fallthru
          _
        %s121 = sand.u32 %s26, 1
        %s122 = scalar_lea.sflag [#allocation3], %s121
        %s123 = sand.u32 %s26, 1
        %s124 = smul.addr %s123, 48
        %s125 = scalar_lea.vmem [#allocation2], %s124
        %p126 = pneg %p39
        %p127 = pneg %p36
        %p128 = pneg %p65
        %p129 = pneg %p62
        %s130 = sand.u32 %s52, 1
        %s131 = scalar_lea.sflag [#allocation4], %s130
        %s132 = sand.u32 %s52, 1
        %s133 = smul.addr %s132, 32
        %s134 = scalar_lea.vmem [#allocation5], %s133
        %v135 = vld [vmem:[%s116] sm:$0xff]
        %v136 = vld [vmem:[%s116 + $0x8] sm:$0xff]
        %s137 = scalar_lea.vmem %s116, 16 [#allocation2]
        %v138 = vld [vmem:[%s137] sm:$0xff]
        %v139 = vld [vmem:[%s137 + $0x8] sm:$0xff]
        %v140 = vadd.f32 %v135, %v138
        %v141 = vadd.f32 %v136, %v139
        %s142 = scalar_lea.vmem %s116, 32 [#allocation2]
        %v143 = vld [vmem:[%s142] sm:$0xff]
        %v144 = vld [vmem:[%s142 + $0x8] sm:$0xff]
        %v145 = vadd.f32 %v140, %v143
        %v146 = vadd.f32 %v141, %v144
        %v147 = vmul.f32 %v145, 0.33333334
        %v148 = vmul.f32 %v146, 0.33333334
        %v149 = vlaneseq
        %v150 = vshrl.u32 %v149, 7
        %v151 = vadd.s32 %v150, 8
        %v152 = vlaneseq
        %v153 = vand.u32 %v152, 127
        %vm154 = vcmp.ge.s32.totalorder %v150, 1
        %vm155 = vcmp.ge.s32.totalorder %v151, 1
        %vm156 = vcmp.lt.s32.totalorder %v150, 15
        %vm157 = vcmp.lt.s32.totalorder %v151, 15
        %vm158 = vcmp.ge.s32.totalorder %v153, 1
        %vm159 = vcmp.lt.s32.totalorder %v153, 15
        %v160 = vrot.slane %v147, 7
        %v161 = vrot.slane %v148, 7
        %vm162 = vcmp.lt.s32.totalorder %v150, 1
        %v163 = vsel %vm162, %v160, %v161
        %v164 = vsel %vm162, %v161, %v160
        %v165 = vsel %vm154, %v164, 0.0
        %v166 = vsel %vm155, %v163, 0.0
        %v167 = vrot.slane %v147, 1
        %v168 = vrot.slane %v148, 1
        %vm169 = vcmp.lt.s32.totalorder %v150, 7
        %v170 = vsel %vm169, %v167, %v168
        %v171 = vsel %vm169, %v168, %v167
        %v172 = vsel %vm156, %v170, 0.0
        %v173 = vsel %vm157, %v171, 0.0
        %v174 = vmul.f32 %v147, 2.0
        %v175 = vmul.f32 %v148, 2.0
        %v176 = vadd.f32 %v165, %v174
        %v177 = vadd.f32 %v166, %v175
        %v178 = vadd.f32 %v176, %v172
        %v179 = vadd.f32 %v177, %v173
        %vm180 = vcmask 1047680
        %181 = vrot.lane.b32.xlu0 %v178, 16
        %v182 = vpop.permute.xlu0 %181
        %v183 = vsel %vm180, %v182, %v178
        %184 = vrot.lane.b32.xlu0 %v179, 16
        %v185 = vpop.permute.xlu0 %184
        %v186 = vsel %vm180, %v185, %v179
        %187 = vrot.lane.b32.xlu0 %v183, 16
        %v188 = vpop.permute.xlu0 %187
        %189 = vrot.lane.b32.xlu0 %v186, 16
        %v190 = vpop.permute.xlu0 %189
        %v191 = vsel %vm180, %v188, %v178
        %v192 = vsel %vm180, %v190, %v179
        %195 = vrot.lane.b32.xlu0 %v191, 113
        %v196 = vpop.permute.xlu0 %195
        %197 = vrot.lane.b32.xlu0 %v192, 113
        %v198 = vpop.permute.xlu0 %197
        %v201 = vsel %vm158, %v196, 0.0
        %v202 = vsel %vm158, %v198, 0.0
        %203 = vrot.lane.b32.xlu0 %v191, 127
        %v204 = vpop.permute.xlu0 %203
        %205 = vrot.lane.b32.xlu0 %v192, 127
        %v206 = vpop.permute.xlu0 %205
        %v209 = vsel %vm159, %v204, 0.0
        %v210 = vsel %vm159, %v206, 0.0
        %v211 = vsub.f32 %v201, %v209
        %v212 = vsub.f32 %v202, %v210
        %213 = vrot.lane.b32.xlu0 %v147, 16
        %v214 = vpop.permute.xlu0 %213
        %v215 = vsel %vm180, %v214, %v147
        %216 = vrot.lane.b32.xlu0 %v148, 16
        %v217 = vpop.permute.xlu0 %216
        %v218 = vsel %vm180, %v217, %v148
        %219 = vrot.lane.b32.xlu0 %v215, 16
        %v220 = vpop.permute.xlu0 %219
        %221 = vrot.lane.b32.xlu0 %v218, 16
        %v222 = vpop.permute.xlu0 %221
        %v223 = vsel %vm180, %v220, %v147
        %v224 = vsel %vm180, %v222, %v148
        %227 = vrot.lane.b32.xlu0 %v223, 113
        %v228 = vpop.permute.xlu0 %227
        %229 = vrot.lane.b32.xlu0 %v224, 113
        %v230 = vpop.permute.xlu0 %229
        %v233 = vsel %vm158, %v228, 0.0
        %v234 = vsel %vm158, %v230, 0.0
        %v235 = vadd.f32 %v233, %v174
        %v236 = vadd.f32 %v234, %v175
        %237 = vrot.lane.b32.xlu0 %v223, 127
        %v238 = vpop.permute.xlu0 %237
        %239 = vrot.lane.b32.xlu0 %v224, 127
        %v240 = vpop.permute.xlu0 %239
        %v243 = vsel %vm159, %v238, 0.0
        %v244 = vsel %vm159, %v240, 0.0
        %v245 = vadd.f32 %v235, %v243
        %v246 = vadd.f32 %v236, %v244
        %v247 = vrot.slane %v245, 7
        %v248 = vrot.slane %v246, 7
        %v249 = vsel %vm162, %v247, %v248
        %v250 = vsel %vm162, %v248, %v247
        %v251 = vsel %vm154, %v250, 0.0
        %v252 = vsel %vm155, %v249, 0.0
        %v253 = vrot.slane %v245, 1
        %v254 = vrot.slane %v246, 1
        %v255 = vsel %vm169, %v253, %v254
        %v256 = vsel %vm169, %v254, %v253
        %v257 = vsel %vm156, %v255, 0.0
        %v258 = vsel %vm157, %v256, 0.0
        %v259 = vsub.f32 %v251, %v257
        %v260 = vsub.f32 %v252, %v258
        %vm261 = vcmask 130048
        %262 = vst.msk [vmem:[%s134] sm:$0xff] %vm261, %v211
        %263 = vst.msk [vmem:[%s134 + $0x8] sm:$0xff] %vm261, %v212
        %s264 = scalar_lea.vmem %s134, 16 [#allocation5]
        %265 = vst.msk [vmem:[%s264] sm:$0xff] %vm261, %v259
        %266 = vst.msk [vmem:[%s264 + $0x8] sm:$0xff] %vm261, %v260
        %s267 = sand.u32 %s52, 1
        %s268 = scalar_lea.sflag [#allocation4], %s267
        %s269 = sand.u32 %s52, 1
        %s270 = smul.addr %s269, 32
        %s271 = scalar_lea.vmem [#allocation5], %s270
        // Predicated region
        $region29: #{tpu_custom_call.1} parent=23 // pred_check
          %p272 = pneg %p62
        $region30: #{tpu_custom_call.1} parent=23 // pred_check_branch
          %274 = sbr.rel (%p272) target = $region32
        $region31: #{tpu_custom_call.1} parent=23 // pred_region
          %s276 = ssub.s32 512, 512
          %277 = vsyncadd %s268, %s276
          %s278 = smul.addr %s18, 4
          %s279 = smul.addr %s278, 128
          %s280 = scalar_lea.hbm %s1, %s279
          %s281 = sshll.u32 %s271, 4
          %s282 = int_to_ptr.vmem [resolvable:$true] %s281
          %287 = dma.vmem_to_hbm [thread:$0]  %s282, 512, %s280, %s268, 128, 128, 8
        $region32: #{tpu_custom_call.1} parent=23 // pred_fallthru
          _
      $region24: #{tpu_custom_call.1} parent=5 // pred_fallthru
        _
      %p288 = scmp.le.s32.totalorder 2, %s13
      // Predicated region
      $region33: #{tpu_custom_call.1} parent=5 // pred_check
        %p289 = pneg %p288
      $region34: #{tpu_custom_call.1} parent=5 // pred_check_branch
        %291 = sbr.rel (%p289) target = $region36
      $region35: #{tpu_custom_call.1} parent=5 // pred_region
        %s292 = ssub.s32 %s13, 2
        // Predicated region
        $region37: #{tpu_custom_call.1} parent=35 // pred_check
          %p293 = pneg %p68
        $region38: #{tpu_custom_call.1} parent=35 // pred_check_branch
          %295 = sbr.rel (%p293) target = $region40
        $region39: #{tpu_custom_call.1} parent=35 // pred_region
          %s296 = sand.u32 %s53, 1
          %s297 = scalar_lea.sflag [#allocation4], %s296
          %s298 = sand.u32 %s53, 1
          %s299 = smul.addr %s298, 32
          %s300 = scalar_lea.vmem [#allocation5], %s299
          %301 = dma.done %s297, 512
        $region40: #{tpu_custom_call.1} parent=35 // pred_fallthru
          _
      $region36: #{tpu_custom_call.1} parent=5 // pred_fallthru
        _
    $region6: #{tpu_custom_call.1} parent=1 // loop_footer
      %s17 = sadd.s32 1, %s13
    $region7: #{tpu_custom_call.1} parent=1 // loop_footer_branch
      %12 = sbr.rel target = $region3
    $region8: #{tpu_custom_call.1} parent=1 // loop_exit
      _
    %302 = vsyncpa [#allocation3], 1
    %s303 = scalar_lea.sflag [#allocation3], 1
    %304 = vsyncpa %s303, 1
    %305 = vsyncpa [#allocation4], 1
    %s306 = scalar_lea.sflag [#allocation4], 1
    %307 = vsyncpa %s306, 1

</llo_original>
